<compile_context>
chip_gen: v7x
topology: tpu7x:2x2x1
jax: 0.10.0
libtpu: 0.0.40
codegen_flags: <defaults>
</compile_context>

<pallas_src>
import functools
from math import factorial

import jax
import jax.numpy as jnp
from jax.experimental import pallas as pl
from jax.experimental.pallas import tpu as pltpu

COMPLEX = jnp.complex64
REAL = jnp.float32

I2 = jnp.eye(2, dtype=COMPLEX)
X2 = jnp.array([[0.0, 1.0], [1.0, 0.0]], dtype=COMPLEX)
Z2 = jnp.array([[1.0, 0.0], [0.0, -1.0]], dtype=COMPLEX)


# ----------------------------- glue: build dense circuit unitaries -----------------------------

def _kron_all(mats):
    return functools.reduce(jnp.kron, mats)


def _op_on(site, op, nqubits):
    mats = [I2] * nqubits
    mats[site] = op
    return _kron_all(mats)


def _rx(theta):
    c = jnp.cos(theta / 2).astype(COMPLEX)
    s = jnp.sin(theta / 2).astype(COMPLEX)
    return c * I2 + (-1j) * s * X2            # single_Rx: iden*cos + exp_pauli_x*sin


def _rz(theta):
    c = jnp.cos(theta / 2).astype(COMPLEX)
    s = jnp.sin(theta / 2).astype(COMPLEX)
    return c * I2 + (-1j) * s * Z2            # single_Rz: iden*cos + exp_pauli_z*sin


def _rotation_layer(thetas, rot_fn):
    return _kron_all([rot_fn(thetas[q]) for q in range(thetas.shape[0])])


def _perceptron_hamiltonian(Js, hs, N):
    """H = sum_k Js[k] Z_k Z_out + hs[0] X_out + hs[1] Z_out  (dt-independent)."""
    nq = N + 1
    ZN = _op_on(N, Z2, nq)
    H = hs[0].astype(COMPLEX) * _op_on(N, X2, nq) + hs[1].astype(COMPLEX) * ZN
    for k in range(N):
        H = H + Js[k].astype(COMPLEX) * (_op_on(k, Z2, nq) @ ZN)
    return H


def _perceptron_unitary_from_H(H, dt, approx):
    """Perceptron gate: sum_{m=0}^{approx} (-i*dt)^m H^m / m!."""
    D = H.shape[0]
    U = jnp.eye(D, dtype=COMPLEX)
    Hp = jnp.eye(D, dtype=COMPLEX)
    for m in range(1, approx + 1):
        Hp = Hp @ H
        U = U + ((-1j * dt) ** m / factorial(m)) * Hp
    return U


def build_time_unitaries(Js, hs, ths, dts, N, L, approx):
    """Dense 2^(N+1) x 2^(N+1) circuit unitary per evolution time
       (gate order per layer: Rx, Rz, Perceptron).  vmapped over dts so the per-time
       Python loop does not balloon the HLO (rotation layers / H are built once per layer)."""
    nq = N + 1
    D = 2 ** nq
    rx_layers = [_rotation_layer(ths[l, 0], _rx) for l in range(L)]
    rz_layers = [_rotation_layer(ths[l, 1], _rz) for l in range(L)]
    Hs = [_perceptron_hamiltonian(Js[l], hs[l], N) for l in range(L)]

    def one_time(dt):
        U = jnp.eye(D, dtype=COMPLEX)
        for l in range(L):
            U = rx_layers[l] @ U
            U = rz_layers[l] @ U
            U = _perceptron_unitary_from_H(Hs[l], dt, approx) @ U
        return U

    return jax.vmap(one_time)(dts)  # (T, D, D) complex64


# ----------------------------- Pallas kernel: the hot path -----------------------------

def witness_kernel(u_ref, psi_ref, c_ref, b_ref, out_ref):
    # u_ref  : (D, 2*T*D)  lane-dense slab [Ur^T | Ui^T]
    # psi_ref: (2, D)      rows [Re psi ; Im psi]
    # c_ref  : (1, T*D)    coefficient row = (W @ seg) * tiled z-diagonal
    # b_ref  : (1,)        Linear bias, in SMEM
    TD = c_ref.shape[-1]

    # Single MXU pass: P = psi_rows @ U_slab -> (2, 2*T*D).
    P = jnp.dot(psi_ref[...], u_ref[...], preferred_element_type=jnp.float32)

    # Complex matvec recovery (all row / lane-major):
    #   phi_r = Ur@pr - Ui@pi ,  phi_i = Ur@pi + Ui@pr
    phi_r = P[0:1, :TD] - P[1:2, TD:]          # (1, T*D)
    phi_i = P[1:2, :TD] + P[0:1, TD:]          # (1, T*D)

    # Expectation values, segment-sum and Linear(T -> 1) folded into one weighted
    # lane reduction; Softsign on the scalar result.
    y = jnp.sum(c_ref[...] * (phi_r * phi_r + phi_i * phi_i),
                axis=-1, keepdims=True) + b_ref[0]          # (1, 1)
    out_ref[...] = y / (1.0 + jnp.abs(y))


def witness_forward(U_stack, psi, z_diag, w, b):
    T, D, _ = U_stack.shape
    TD = T * D

    # Lane-dense unitary slab: (D, 2*T*D) = [Ur^T | Ui^T].
    ur = jnp.real(U_stack).reshape(TD, D).astype(REAL)
    ui = jnp.imag(U_stack).reshape(TD, D).astype(REAL)
    u_slab = jnp.concatenate([ur.T, ui.T], axis=1)                      # (D, 2*T*D)

    # Row-layout state: (2, D) = [Re psi ; Im psi].
    psi_slab = jnp.stack([jnp.real(psi).astype(REAL),
                          jnp.imag(psi).astype(REAL)], axis=0)          # (2, D)

    # Fold Linear weights, per-time segment-sum and the diagonal observable into one row:
    #   c[t*D + d] = w[t] * z_diag[d]
    w_flat = w.reshape(T).astype(REAL)
    c_row = (jnp.repeat(w_flat, D) * jnp.tile(z_diag.astype(REAL), (T,))).reshape(1, TD)

    b_arr = b.reshape(1).astype(REAL)

    out = pl.pallas_call(
        witness_kernel,
        out_shape=jax.ShapeDtypeStruct((1, 1), REAL),
        in_specs=[
            pl.BlockSpec(memory_space=pltpu.MemorySpace.VMEM),          # u_slab
            pl.BlockSpec(memory_space=pltpu.MemorySpace.VMEM),          # psi_slab
            pl.BlockSpec(memory_space=pltpu.MemorySpace.VMEM),          # c_row
            pl.BlockSpec(memory_space=pltpu.MemorySpace.SMEM),          # bias scalar
        ],
        out_specs=pl.BlockSpec(memory_space=pltpu.MemorySpace.VMEM),
    )(u_slab, psi_slab, c_row, b_arr)
    return out[0, 0]


# ----------------------------- pure-JAX reference -----------------------------

def reference_forward(U_stack, psi, z_diag, w, b):
    phis = jnp.einsum('tij,j->ti', U_stack, psi)
    v = jnp.real(jnp.sum(jnp.conj(phis) * (z_diag[None, :].astype(COMPLEX) * phis), axis=1))
    y = jnp.dot(w.reshape(-1).astype(REAL), v.astype(REAL)) + b.reshape(()).astype(REAL)
    return y / (1.0 + jnp.abs(y))


# ----------------------------- main -----------------------------

if __name__ == "__main__":
    N, L, approx = 3, 2, 1                     # N input qubits + 1 output qubit -> D = 16
    dts = jnp.array([0.05 * (i + 1) for i in range(8)], dtype=REAL)
    T = dts.shape[0]
    nq = N + 1
    D = 2 ** nq                                # T*D = 128, 2*T*D = 256 (full MXU width)

    key = jax.random.PRNGKey(0)
    k_js, k_ths, k_w, k_b, k_pr, k_pi = jax.random.split(key, 6)

    # Parameters (deterministic, matching the module's __init__ shapes/distributions)
    Js = jnp.pi * (2.0 * jax.random.uniform(k_js, (L, N)) - 1.0)
    hs = jnp.tile(jnp.array([10.0, 0.0], dtype=REAL), (L, 1))          # fixed fields (fix_omega=True)
    ths = jnp.pi * (2.0 * jax.random.uniform(k_ths, (L, 4, N + 1)) - 1.0)
    bound = 1.0 / (T ** 0.5)
    W = jax.random.uniform(k_w, (1, T), minval=-bound, maxval=bound)
    Wb = jax.random.uniform(k_b, (1,), minval=-bound, maxval=bound)

    # Random normalized input state (stands in for the MPS input of the original module)
    psi = (jax.random.normal(k_pr, (D,)) + 1j * jax.random.normal(k_pi, (D,))).astype(COMPLEX)
    psi = psi / jnp.linalg.norm(psi)

    # Observable: identity on the N input qubits, pauli_z on the output qubit (diagonal).
    z_diag = jnp.kron(jnp.ones(2 ** N, dtype=REAL), jnp.array([1.0, -1.0], dtype=REAL))

    U_stack = build_time_unitaries(Js, hs, ths, dts, N, L, approx)     # (T, D, D) complex64

    out = witness_forward(U_stack, psi, z_diag, W, Wb)
    out = jax.block_until_ready(out)

    ref = reference_forward(U_stack, psi, z_diag, W, Wb)
    assert jnp.allclose(out, ref, rtol=1e-3, atol=1e-3), (out, ref)
    print("KERNEL_OK")
</pallas_src>

<mosaic_0001>
module attributes {stable_mosaic.version = 11 : i64} {
  func.func @witness_kernel(%arg0: memref<16x256xf32, #tpu.memory_space<vmem>>, %arg1: memref<2x16xf32, #tpu.memory_space<vmem>>, %arg2: memref<1x128xf32, #tpu.memory_space<vmem>>, %arg3: memref<1xf32, #tpu.memory_space<smem>>, %arg4: memref<1x1xf32, #tpu.memory_space<vmem>>) attributes {dimension_semantics = [], scalar_prefetch = 0 : i64, scratch_operands = 0 : i64, tpu.core_type = #tpu.core_type<tc>} {
    %c0 = arith.constant 0 : index
    %c0_0 = arith.constant 0 : index
    %0 = vector.load %arg1[%c0, %c0_0] : memref<2x16xf32, #tpu.memory_space<vmem>>, vector<2x16xf32>
    %c0_1 = arith.constant 0 : index
    %c0_2 = arith.constant 0 : index
    %1 = vector.load %arg0[%c0_1, %c0_2] : memref<16x256xf32, #tpu.memory_space<vmem>>, vector<16x256xf32>
    %cst = arith.constant dense<0.000000e+00> : vector<2x256xf32>
    %2 = tpu.matmul %0, %1, %cst {dimension_numbers = #tpu.dot_dimension_numbers<[1], [0], [0], [1], [0, 0, 1, 1], [], []>} : vector<2x16xf32>, vector<16x256xf32>, vector<2x256xf32> -> vector<2x256xf32>
    %3 = vector.extract_strided_slice %2 {offsets = [0, 0], sizes = [1, 128], strides = [1, 1]} : vector<2x256xf32> to vector<1x128xf32>
    %4 = vector.extract_strided_slice %2 {offsets = [1, 128], sizes = [1, 128], strides = [1, 1]} : vector<2x256xf32> to vector<1x128xf32>
    %5 = arith.subf %3, %4 : vector<1x128xf32>
    %6 = vector.extract_strided_slice %2 {offsets = [1, 0], sizes = [1, 128], strides = [1, 1]} : vector<2x256xf32> to vector<1x128xf32>
    %7 = vector.extract_strided_slice %2 {offsets = [0, 128], sizes = [1, 128], strides = [1, 1]} : vector<2x256xf32> to vector<1x128xf32>
    %8 = arith.addf %6, %7 : vector<1x128xf32>
    %c0_3 = arith.constant 0 : index
    %c0_4 = arith.constant 0 : index
    %9 = vector.load %arg2[%c0_3, %c0_4] : memref<1x128xf32, #tpu.memory_space<vmem>>, vector<1x128xf32>
    %10 = arith.mulf %5, %5 : vector<1x128xf32>
    %11 = arith.mulf %8, %8 : vector<1x128xf32>
    %12 = arith.addf %10, %11 : vector<1x128xf32>
    %13 = arith.mulf %9, %12 : vector<1x128xf32>
    %cst_5 = arith.constant dense<0.000000e+00> : vector<1xf32>
    %14 = vector.multi_reduction <add>, %13, %cst_5 [1] : vector<1x128xf32> to vector<1xf32>
    %15 = vector.shape_cast %14 : vector<1xf32> to vector<1x1xf32>
    %c0_6 = arith.constant 0 : index
    %16 = memref.load %arg3[%c0_6] : memref<1xf32, #tpu.memory_space<smem>>
    %17 = vector.broadcast %16 : f32 to vector<1x1xf32>
    %18 = arith.addf %15, %17 : vector<1x1xf32>
    %19 = math.absf %18 : vector<1x1xf32>
    %cst_7 = arith.constant 1.000000e+00 : f32
    %20 = vector.broadcast %cst_7 : f32 to vector<1x1xf32>
    %21 = arith.addf %20, %19 : vector<1x1xf32>
    %22 = arith.divf %18, %21 : vector<1x1xf32>
    %c0_8 = arith.constant 0 : index
    %c0_9 = arith.constant 0 : index
    %23 = vector.load %arg4[%c0_8, %c0_9] : memref<1x1xf32, #tpu.memory_space<vmem>>, vector<1x1xf32>
    tpu.vector_store %arg4[%c0_8, %c0_9], %22 {strides = array<i32>} : memref<1x1xf32, #tpu.memory_space<vmem>>, vector<1x1xf32>,
    return
  }
}

</mosaic_0001>

<llo_original>
// kernel: tpu_custom_call.1
$region0: #{tpu_custom_call.1}
  #allocation0 [shape = 'u32[]', space=smem, size = 0x4, offset = 0x4, fixed_abs, tag = 'smem constant byte address 0x4 - core index']
  #allocation1 [shape = 'u32[144,128]{1,0:T(1,128)}', space=vmem, size = 0x12000, scoped, tag = 'internal scratch']
  #allocation2 [shape = 'f32[1]{0:T(128)S(6)}', space=smem, size = 0x200, scoped, tag = 'scoped memory for tpu_custom_call.1']
  %s0 = inlined_call_operand.hbm [shape: f32[16,256], index: 0, kind: input, shape index: {}]
  %s1 = inlined_call_operand.vmem [shape: f32[2,16], index: 1, kind: input, shape index: {}]
  %s2 = inlined_call_operand.vmem [shape: f32[1,128], index: 2, kind: input, shape index: {}]
  %s3 = inlined_call_operand.<no memory space> [shape: f32[1], index: 3, kind: input, shape index: {}]
  %s4 = inlined_call_operand.hbm [shape: f32[1,1], index: 4, kind: output, shape index: {}]
  %s5 = sld [smem:[#allocation0]]
  $region30: #{tpu_custom_call.1} parent=0
    _
  %s7 = ssub.s32 1, %s5
  %s8 = scalar_select 0, %s7, %s5
  %9 = sst [smem:[#allocation2]] %s3
  $region1: #{tpu_custom_call.1} parent=0
    #allocation3 [shape = 'u8[16384]{0}', space=vmem, size = 0x4000, scoped, tag = 'input window, operand 0, single buffered']
    #allocation4 [shape = 's32[1]{0}', space=sflag, size = 0x4, scoped, tag = 'scoped memory for tpu_custom_call.1']
    #allocation5 [shape = 's32[1]{0}', space=sflag, size = 0x4, scoped, tag = 'scoped memory for tpu_custom_call.1']
    #allocation6 [shape = 'u8[512]{0}', space=vmem, size = 0x400, scoped, tag = 'output window, operand 0, single buffered']
    %10 = vsyncpa [#allocation4], 0
    %11 = vsyncpa [#allocation5], 0
    // Predicated region
    $region2: #{tpu_custom_call.1} parent=1 // pred_check
      _
    $region3: #{tpu_custom_call.1} parent=1 // pred_check_branch
      %13 = sbr.rel (0) target = $region5
    $region4: #{tpu_custom_call.1} parent=1 // pred_region
      %s15 = ssub.s32 512, 512
      %16 = vsyncadd [#allocation4], %s15
      %s17 = sshll.u32 [#allocation3], 4
      %s18 = int_to_ptr.vmem [resolvable:$true] %s17
      %23 = dma.hbm_to_vmem [thread:$0]  %s0, 512, %s18, [#allocation4], 256, 256, 16
    $region5: #{tpu_custom_call.1} parent=1 // pred_fallthru
      _
    // Predicated region
    $region6: #{tpu_custom_call.1} parent=1 // pred_check
      _
    $region7: #{tpu_custom_call.1} parent=1 // pred_check_branch
      %25 = sbr.rel (0) target = $region9
    $region8: #{tpu_custom_call.1} parent=1 // pred_region
      _
    $region9: #{tpu_custom_call.1} parent=1 // pred_fallthru
      _
    // Predicated region
    $region10: #{tpu_custom_call.1} parent=1 // pred_check
      _
    $region11: #{tpu_custom_call.1} parent=1 // pred_check_branch
      %27 = sbr.rel (0) target = $region13
    $region12: #{tpu_custom_call.1} parent=1 // pred_region
      _
    $region13: #{tpu_custom_call.1} parent=1 // pred_fallthru
      _
    // Predicated region
    $region14: #{tpu_custom_call.1} parent=1 // pred_check
      _
    $region15: #{tpu_custom_call.1} parent=1 // pred_check_branch
      %29 = sbr.rel (0) target = $region17
    $region16: #{tpu_custom_call.1} parent=1 // pred_region
      _
    $region17: #{tpu_custom_call.1} parent=1 // pred_fallthru
      _
    // Predicated region
    $region18: #{tpu_custom_call.1} parent=1 // pred_check
      _
    $region19: #{tpu_custom_call.1} parent=1 // pred_check_branch
      %31 = sbr.rel (0) target = $region21
    $region20: #{tpu_custom_call.1} parent=1 // pred_region
      %32 = dma.done [#allocation4], 512
    $region21: #{tpu_custom_call.1} parent=1 // pred_fallthru
      _
    %v33 = vld [vmem:[%s1] sm:$0x3]
    %v34 = vld [vmem:[#allocation3] sm:$0xff]
    %v35 = vld [vmem:[#allocation3 + $0x8] sm:$0xff]
    %v36 = vld [vmem:[#allocation3 + $0x10] sm:$0xff]
    %v37 = vld [vmem:[#allocation3 + $0x18] sm:$0xff]
    %vm38 = vcmask 130048
    %v40 = vsel %vm38, %v33, 0
    %42 = vmatprep.subr.mxu0 %v35
    %43 = vmatpush1.msra.mxu0 %v34
    %44 = vmatprep.subr.mxu0 %v37
    %45 = vmatpush1.msra.mxu0 %v36
    %46 = vmatprep.subr.mxu0 0.0
    %47 = vmatpush1.msra.mxu0 0.0
    %48 = vmatprep.subr.mxu0 0.0
    %49 = vmatpush1.msra.mxu0 0.0
    %50 = vmatprep.subr.mxu0 0.0
    %51 = vmatpush1.msra.mxu0 0.0
    %52 = vmatprep.subr.mxu0 0.0
    %53 = vmatpush1.msra.mxu0 0.0
    %54 = vmatprep.subr.mxu0 0.0
    %55 = vmatpush1.msra.mxu0 0.0
    %56 = vmatprep.subr.mxu0 0.0
    %57 = vmatpush1.msra.mxu0 0.0
    %58 = vmatprep.subr.mxu0 0.0
    %59 = vmatpush1.msra.mxu0 0.0
    %60 = vmatprep.subr.mxu0 0.0
    %61 = vmatpush1.msra.mxu0 0.0
    %62 = vmatprep.subr.mxu0 0.0
    %63 = vmatpush1.msra.mxu0 0.0
    %64 = vmatprep.subr.mxu0 0.0
    %65 = vmatpush1.msra.mxu0 0.0
    %66 = vmatprep.subr.mxu0 0.0
    %67 = vmatpush1.msra.mxu0 0.0
    %68 = vmatprep.subr.mxu0 0.0
    %69 = vmatpush1.msra.mxu0 0.0
    %70 = vmatprep.subr.mxu0 0.0
    %71 = vmatpush1.msra.mxu0 0.0
    %72 = vmatprep.subr.mxu0 0.0
    %73 = vmatpush1.msra.mxu0 0.0
    %74 = vmatprep.subr.mxu0 0.0
    %75 = vmatpush1.msra.mxu0 0.0
    %76 = vmatprep.subr.mxu0 0.0
    %77 = vmatpush1.msra.mxu0 0.0
    %78 = vmatprep.subr.mxu0 0.0
    %79 = vmatpush1.msra.mxu0 0.0
    %80 = vmatprep.subr.mxu0 0.0
    %81 = vmatpush1.msra.mxu0 0.0
    %82 = vmatprep.subr.mxu0 0.0
    %83 = vmatpush1.msra.mxu0 0.0
    %84 = vmatprep.subr.mxu0 0.0
    %85 = vmatpush1.msra.mxu0 0.0
    %86 = vmatprep.subr.mxu0 0.0
    %87 = vmatpush1.msra.mxu0 0.0
    %88 = vmatprep.subr.mxu0 0.0
    %89 = vmatpush1.msra.mxu0 0.0
    %90 = vmatprep.subr.mxu0 0.0
    %91 = vmatpush1.msra.mxu0 0.0
    %92 = vmatprep.subr.mxu0 0.0
    %93 = vmatpush1.msra.mxu0 0.0
    %94 = vmatprep.subr.mxu0 0.0
    %95 = vmatpush1.msra.mxu0 0.0
    %96 = vmatprep.subr.mxu0 0.0
    %97 = vmatpush1.msra.mxu0 0.0
    %98 = vmatprep.subr.mxu0 0.0
    %99 = vmatpush1.msra.mxu0 0.0
    %100 = vmatprep.subr.mxu0 0.0
    %101 = vmatpush1.msra.mxu0 0.0
    %102 = vmatprep.subr.mxu0 0.0
    %103 = vmatpush1.msra.mxu0 0.0
    %104 = vmatprep.subr.mxu0 0.0
    %105 = vmatpush1.msra.mxu0 0.0
    %106 = vmatprep.mubr.f32.mxu0 0.0
    %107 = vmatmul.mubr.f32.gmra.mrb[0].mxu0 %v40
    %v108 = vpop.f32.mrb[0].mxu0
    %v109 = vadd.f32 0.0, %v108
    %v110 = vpop.f32.mrb[0].mxu0
    %v111 = vadd.f32 0.0, %v110
    %112 = vdwg.mxu0
    %v114 = vrot.slane %v111, 1
    %v116 = vsub.f32 %v109, %v114
    %v117 = vrot.slane %v111, 7
    %v119 = vadd.f32 %v109, %v117
    %v120 = vld [vmem:[%s2] sm:$0x1]
    %v121 = vmul.f32 %v116, %v116
    %v122 = vmul.f32 %v119, %v119
    %v124 = vrot.slane %v122, 1
    %v126 = vadd.f32 %v121, %v124
    %v127 = vmul.f32 %v120, %v126
    %vm128 = vcmask 1040384
    %v129 = vsel %vm128, %v127, 0.0
    %130 = vadd.xlane.f32.xlu0 %v129
    %v131 = vpop.xlane.xlu0 %130
    %s132 = sld [smem:[#allocation2]]
    %v133 = vstv %s132
    %v134 = vadd.f32 %v131, %v133
    %v135 = vand.u32 2147483647, %v134
    %v136 = vadd.f32 %v135, 1.0
    %v137 = vrcp.pop %v136
    %v138 = vmul.f32 %v134, %v137
    %vm139 = vcmask 0
    %140 = vst.msk [vmem:[#allocation6] sm:$0x1] %vm139, %v138
    // Predicated region
    $region22: #{tpu_custom_call.1} parent=1 // pred_check
      _
    $region23: #{tpu_custom_call.1} parent=1 // pred_check_branch
      %142 = sbr.rel (0) target = $region25
    $region24: #{tpu_custom_call.1} parent=1 // pred_region
      %s144 = ssub.s32 16, 16
      %145 = vsyncadd [#allocation5], %s144
      %s147 = sshll.u32 [#allocation6], 4
      %s148 = int_to_ptr.vmem [resolvable:$true] %s147
      %150 = dma.vmem_to_hbm [thread:$0]  %s148, 16, %s4, [#allocation5]
    $region25: #{tpu_custom_call.1} parent=1 // pred_fallthru
      _
    // Predicated region
    $region26: #{tpu_custom_call.1} parent=1 // pred_check
      _
    $region27: #{tpu_custom_call.1} parent=1 // pred_check_branch
      %152 = sbr.rel (0) target = $region29
    $region28: #{tpu_custom_call.1} parent=1 // pred_region
      %153 = dma.done [#allocation5], 16
    $region29: #{tpu_custom_call.1} parent=1 // pred_fallthru
      _
    %154 = vsyncpa [#allocation4], 1
    %155 = vsyncpa [#allocation5], 1

</llo_original>
